<compile_context>
chip_gen: v7x
topology: tpu7x:2x2x1
jax: 0.10.0
libtpu: 0.0.40
codegen_flags: <defaults>
</compile_context>

<pallas_src>
import jax
import jax.numpy as jnp
from jax.experimental import pallas as pl
from jax.experimental.pallas import tpu as pltpu


def _normalize_kernel(x_ref, scale_ref, bias_ref, o_ref):
    # x_ref / o_ref : (tile_rows, tile_hw) block of the (N*C, H*W) view.
    # scale_ref / bias_ref : (tile_rows, 1) per-step blocks (lane-broadcast).
    x = x_ref[...].astype(jnp.float32)  # f32 math (safe on v5e: no bf16 VPU)
    o_ref[...] = (x * scale_ref[...] + bias_ref[...]).astype(o_ref.dtype)


def _pick_tiles(nc, hw, itemsize, target_bytes):
    """Pick (tile_rows, tile_hw) so one x block is ~target_bytes.

    Constraints: tile_rows divisible by 8 or == nc; tile_hw divisible by 128
    or == hw (full-dim blocks are always legal; cdiv grid masks boundaries).
    """
    # --- lane (last-dim) tile: cap block bytes even for huge spatial sizes ---
    if hw * itemsize * 8 <= target_bytes:
        tile_hw = hw
    else:
        tile_hw = max(128, (target_bytes // (8 * itemsize)) // 128 * 128)
        if tile_hw >= hw:
            tile_hw = hw

    # --- sublane (row) tile ---
    rows = max(1, target_bytes // (tile_hw * itemsize))
    if rows >= nc:
        rows = nc
    else:
        rows = max(8, (rows // 8) * 8)
        if rows >= nc:
            rows = nc

    # Megacore (v7x): prefer >=2 grid steps when the problem is big enough.
    if rows == nc and tile_hw == hw and nc >= 16:
        rows = ((pl.cdiv(nc, 2) + 7) // 8) * 8

    # Balance the row grid (avoid one huge + one tiny block).
    grid_rows = pl.cdiv(nc, rows)
    if grid_rows > 1 and rows < nc:
        rows = min(rows, ((pl.cdiv(nc, grid_rows) + 7) // 8) * 8)

    return rows, tile_hw


def normalize_layer(image, mean, std, *,
                    block_target_bytes=6 * 1024 * 1024,
                    vmem_limit_bytes=48 * 1024 * 1024):
    """(image - mean[:,None,None]) / std[:,None,None] for NCHW `image`."""
    N, C, H, W = image.shape
    HW = H * W
    NC = N * C

    # Flattened view: (N*C, H*W).
    x2d = image.reshape(NC, HW)

    # Precompute in f32: out = x * (1/std) + (-mean/std).
    mean_c = jnp.broadcast_to(jnp.asarray(mean, dtype=jnp.float32), (C,))
    std_c = jnp.broadcast_to(jnp.asarray(std, dtype=jnp.float32), (C,))
    scale_c = 1.0 / std_c
    bias_c = -mean_c * scale_c
    scale_rows = jnp.tile(scale_c, (N,)).reshape(NC, 1)
    bias_rows = jnp.tile(bias_c, (N,)).reshape(NC, 1)

    itemsize = jnp.dtype(image.dtype).itemsize
    tile_rows, tile_hw = _pick_tiles(NC, HW, itemsize, block_target_bytes)
    grid = (pl.cdiv(NC, tile_rows), pl.cdiv(HW, tile_hw))

    out2d = pl.pallas_call(
        _normalize_kernel,
        out_shape=jax.ShapeDtypeStruct((NC, HW), image.dtype),
        grid_spec=pltpu.PrefetchScalarGridSpec(
            num_scalar_prefetch=0,
            grid=grid,
            in_specs=[
                pl.BlockSpec((tile_rows, tile_hw), lambda i, j: (i, j)),
                pl.BlockSpec((tile_rows, 1), lambda i, j: (i, 0)),
                pl.BlockSpec((tile_rows, 1), lambda i, j: (i, 0)),
            ],
            out_specs=pl.BlockSpec((tile_rows, tile_hw), lambda i, j: (i, j)),
        ),
        compiler_params=pltpu.CompilerParams(
            dimension_semantics=("parallel", "parallel"),
            vmem_limit_bytes=vmem_limit_bytes,
        ),
    )(x2d, scale_rows, bias_rows)

    return out2d.reshape(N, C, H, W)


if __name__ == "__main__":
    # Small NCHW example consistent with the module: batch=2, channels=4, 16x16.
    N, C, H, W = 2, 4, 16, 16
    key = jax.random.PRNGKey(0)
    image = jax.random.normal(key, (N, C, H, W), dtype=jnp.float32)

    # Deterministic per-channel normalization constants (as in __init__(mean, std)).
    mean = jnp.array([0.485, 0.456, 0.406, 0.5], dtype=jnp.float32)
    std = jnp.array([0.229, 0.224, 0.225, 0.25], dtype=jnp.float32)

    out = normalize_layer(image, mean, std)
    out = jax.block_until_ready(out)

    # Reference check in plain JAX (mirrors PyTorch broadcast semantics).
    ref = (image - mean.reshape(-1, 1, 1)) / std.reshape(-1, 1, 1)
    assert out.shape == image.shape and out.dtype == image.dtype
    assert jnp.allclose(out, ref, atol=1e-5, rtol=1e-5)

    print("KERNEL_OK")
</pallas_src>

<mosaic_0001>
module attributes {stable_mosaic.version = 11 : i64} {
  func.func @_normalize_kernel(%arg0: i32, %arg1: i32, %arg2: memref<8x256xf32, #tpu.memory_space<vmem>>, %arg3: memref<8x1xf32, #tpu.memory_space<vmem>>, %arg4: memref<8x1xf32, #tpu.memory_space<vmem>>, %arg5: memref<8x256xf32, #tpu.memory_space<vmem>>) attributes {dimension_semantics = [#tpu.dimension_semantics<parallel>, #tpu.dimension_semantics<parallel>], iteration_bounds = array<i64: 1, 1>, scalar_prefetch = 0 : i64, scratch_operands = 0 : i64, tpu.core_type = #tpu.core_type<tc>, window_params = [{transform_indices = @transform_0, window_bounds = array<i64: 8, 256>}, {transform_indices = @transform_1, window_bounds = array<i64: 8, 1>}, {transform_indices = @transform_2, window_bounds = array<i64: 8, 1>}, {transform_indices = @transform_3, window_bounds = array<i64: 8, 256>}]} {
    %c0 = arith.constant 0 : index
    %c0_0 = arith.constant 0 : index
    %0 = vector.load %arg2[%c0, %c0_0] : memref<8x256xf32, #tpu.memory_space<vmem>>, vector<8x256xf32>
    %c0_1 = arith.constant 0 : index
    %c0_2 = arith.constant 0 : index
    %1 = vector.load %arg3[%c0_1, %c0_2] : memref<8x1xf32, #tpu.memory_space<vmem>>, vector<8x1xf32>
    %2 = vector.broadcast %1 : vector<8x1xf32> to vector<8x256xf32>
    %3 = arith.mulf %0, %2 : vector<8x256xf32>
    %c0_3 = arith.constant 0 : index
    %c0_4 = arith.constant 0 : index
    %4 = vector.load %arg4[%c0_3, %c0_4] : memref<8x1xf32, #tpu.memory_space<vmem>>, vector<8x1xf32>
    %5 = vector.broadcast %4 : vector<8x1xf32> to vector<8x256xf32>
    %6 = arith.addf %3, %5 : vector<8x256xf32>
    %c0_5 = arith.constant 0 : index
    %c0_6 = arith.constant 0 : index
    %7 = vector.load %arg5[%c0_5, %c0_6] : memref<8x256xf32, #tpu.memory_space<vmem>>, vector<8x256xf32>
    tpu.vector_store %arg5[%c0_5, %c0_6], %6 {strides = array<i32>} : memref<8x256xf32, #tpu.memory_space<vmem>>, vector<8x256xf32>,
    return
  }
  func.func @transform_0(%arg0: i32, %arg1: i32) -> (i32, i32) {
    %c0_i32 = arith.constant 0 : i32
    return %arg0, %arg1 : i32, i32
  }
  func.func @transform_1(%arg0: i32, %arg1: i32) -> (i32, i32) {
    %c0_i32 = arith.constant 0 : i32
    %c0_i32_0 = arith.constant 0 : i32
    return %arg0, %c0_i32 : i32, i32
  }
  func.func @transform_2(%arg0: i32, %arg1: i32) -> (i32, i32) {
    %c0_i32 = arith.constant 0 : i32
    %c0_i32_0 = arith.constant 0 : i32
    return %arg0, %c0_i32 : i32, i32
  }
  func.func @transform_3(%arg0: i32, %arg1: i32) -> (i32, i32) {
    %c0_i32 = arith.constant 0 : i32
    return %arg0, %arg1 : i32, i32
  }
}

</mosaic_0001>

<llo_original>
// kernel: tpu_custom_call.1
$region0: #{tpu_custom_call.1}
  #allocation0 [shape = 'u32[]', space=smem, size = 0x4, offset = 0x4, fixed_abs, tag = 'smem constant byte address 0x4 - core index']
  #allocation1 [shape = 'u32[144,128]{1,0:T(1,128)}', space=vmem, size = 0x12000, scoped, tag = 'internal scratch']
  %s0 = inlined_call_operand.vmem [shape: f32[8,256], index: 0, kind: input, shape index: {}]
  %s1 = inlined_call_operand.vmem [shape: f32[8,1], index: 1, kind: input, shape index: {}]
  %s2 = inlined_call_operand.vmem [shape: f32[8,1], index: 2, kind: input, shape index: {}]
  %s3 = inlined_call_operand.hbm [shape: f32[8,256], index: 3, kind: output, shape index: {}]
  %s4 = sld [smem:[#allocation0]]
  $region22: #{tpu_custom_call.1} parent=0
    _
  %s6 = ssub.s32 1, %s4
  %s7 = scalar_select 0, %s6, %s4
  $region1: #{tpu_custom_call.1} parent=0
    #allocation2 [shape = 'u8[8192]{0}', space=vmem, size = 0x2000, scoped, tag = 'output window, operand 0, single buffered']
    #allocation3 [shape = 's32[1]{0}', space=sflag, size = 0x4, scoped, tag = 'scoped memory for tpu_custom_call.1']
    %8 = vsyncpa [#allocation3], 0
    // Predicated region
    $region2: #{tpu_custom_call.1} parent=1 // pred_check
      _
    $region3: #{tpu_custom_call.1} parent=1 // pred_check_branch
      %10 = sbr.rel (0) target = $region5
    $region4: #{tpu_custom_call.1} parent=1 // pred_region
      _
    $region5: #{tpu_custom_call.1} parent=1 // pred_fallthru
      _
    // Predicated region
    $region6: #{tpu_custom_call.1} parent=1 // pred_check
      _
    $region7: #{tpu_custom_call.1} parent=1 // pred_check_branch
      %12 = sbr.rel (0) target = $region9
    $region8: #{tpu_custom_call.1} parent=1 // pred_region
      _
    $region9: #{tpu_custom_call.1} parent=1 // pred_fallthru
      _
    // Predicated region
    $region10: #{tpu_custom_call.1} parent=1 // pred_check
      _
    $region11: #{tpu_custom_call.1} parent=1 // pred_check_branch
      %14 = sbr.rel (0) target = $region13
    $region12: #{tpu_custom_call.1} parent=1 // pred_region
      _
    $region13: #{tpu_custom_call.1} parent=1 // pred_fallthru
      _
    %v15 = vld [vmem:[%s0] sm:$0xff]
    %v16 = vld [vmem:[%s0 + $0x8] sm:$0xff]
    %v17 = vld [vmem:[%s1] sm:$0xff]
    %19 = vset.pattern.permute.xlu0 0
    %20 = vperm.xlu0 %19, %v17
    %v21 = vpop.permute.xlu0 %20
    %v23 = vmul.f32 %v15, %v21
    %v24 = vmul.f32 %v16, %v21
    %v25 = vld [vmem:[%s2] sm:$0xff]
    %27 = vset.pattern.permute.xlu0 0
    %28 = vperm.xlu0 %27, %v25
    %v29 = vpop.permute.xlu0 %28
    %v31 = vadd.f32 %v23, %v29
    %v32 = vadd.f32 %v24, %v29
    %33 = vst [vmem:[#allocation2] sm:$0xff] %v31
    %34 = vst [vmem:[#allocation2 + $0x8] sm:$0xff] %v32
    // Predicated region
    $region14: #{tpu_custom_call.1} parent=1 // pred_check
      _
    $region15: #{tpu_custom_call.1} parent=1 // pred_check_branch
      %36 = sbr.rel (0) target = $region17
    $region16: #{tpu_custom_call.1} parent=1 // pred_region
      %s38 = ssub.s32 256, 256
      %39 = vsyncadd [#allocation3], %s38
      %s41 = sshll.u32 [#allocation2], 4
      %s42 = int_to_ptr.vmem [resolvable:$true] %s41
      %44 = dma.vmem_to_hbm [thread:$0]  %s42, 256, %s3, [#allocation3]
    $region17: #{tpu_custom_call.1} parent=1 // pred_fallthru
      _
    // Predicated region
    $region18: #{tpu_custom_call.1} parent=1 // pred_check
      _
    $region19: #{tpu_custom_call.1} parent=1 // pred_check_branch
      %46 = sbr.rel (0) target = $region21
    $region20: #{tpu_custom_call.1} parent=1 // pred_region
      %47 = dma.done [#allocation3], 256
    $region21: #{tpu_custom_call.1} parent=1 // pred_fallthru
      _
    %48 = vsyncpa [#allocation3], 1

</llo_original>
